<compile_context>
chip_gen: v5e
topology: v5e:2x2
jax: 0.10.0
libtpu: 0.0.40
codegen_flags: <defaults>
</compile_context>

<pallas_src>
import jax
import jax.numpy as jnp
from jax.experimental import pallas as pl
from jax.experimental.pallas import tpu as pltpu

_LANE = 128    # lane width (last vreg dim)
_SUBLANE = 8   # sublane width (second-to-last vreg dim, f32)


def _round_up(v, m):
    return (v + m - 1) // m * m


def _pad_to(a, shape):
    return jnp.pad(a, [(0, t - s) for s, t in zip(a.shape, shape)])


def gc_gcn_kernel(adj_ref, x_ref, w1_ref, b1_ref, w2_ref, b2_ref, out_ref):
    # Blocks: adj (TB, N, N) bf16, x (TB, N, in_dim) bf16, w1 (in_dim, out_dim) bf16,
    #         b1 (1, out_dim) f32, w2 (out_dim, nc_p) f32, b2 (1, nc_p) f32,
    #         out (TB, nc_p) f32.
    A = adj_ref[...]                                       # (TB, N, N) bf16
    X = x_ref[...]                                         # (TB, N, in_dim) bf16
    tb, n, _ = A.shape

    # DGL GraphConv norm='both': degrees clamped to >= 1, math in f32.
    inv_dst = jax.lax.rsqrt(jnp.maximum(
        jnp.sum(A, axis=2, keepdims=True, dtype=jnp.float32), 1.0))   # (TB,N,1)
    inv_src = jax.lax.rsqrt(jnp.maximum(
        jnp.sum(A, axis=1, keepdims=True, dtype=jnp.float32), 1.0))   # (TB,1,N)

    # Fold the norm into the small feature operands instead of materializing
    # a (TB,N,N) a_hat (diagonal scaling commutes through the matmul).
    x_scaled = (X.astype(jnp.float32)
                * inv_src.reshape(tb, n, 1)).astype(jnp.bfloat16)     # (TB,N,in)

    # Aggregate: batched bf16 (N,N) @ (N,in_dim) over the TB graphs, f32 acc.
    agg = jnp.einsum("bij,bjf->bif", A, x_scaled,
                     preferred_element_type=jnp.float32)              # (TB,N,in)
    agg = agg * inv_dst                                               # dst norm

    # GraphConv projection fused across graphs as one tall bf16 matmul,
    # then bias + ReLU in f32.
    h = jnp.dot(agg.reshape(tb * n, -1).astype(jnp.bfloat16), w1_ref[...],
                preferred_element_type=jnp.float32) + b1_ref[...]
    h = jnp.maximum(h, 0.0)                                           # (TB*N,out)

    # dgl.mean_nodes readout (every graph has exactly N real nodes).
    pooled = jnp.mean(h.reshape(tb, n, -1), axis=1)                   # (TB,out)

    # Final nn.Linear on the lane-padded class dim -> unmasked (TB, nc_p) store.
    out_ref[...] = jnp.dot(pooled, w2_ref[...],
                           preferred_element_type=jnp.float32) + b2_ref[...]


def gc_gcn_forward(adj, x, w1, b1, w2, b2, tb_target=256):
    B, N, _ = adj.shape
    in_dim = x.shape[-1]
    out_dim = w1.shape[-1]
    n_classes = w2.shape[-1]

    # Pad only the class dim to the 128-lane width (lane-dense output store).
    nc_p = _round_up(n_classes, _LANE)

    # Per-generation VMEM budget: 128 MiB on v5e/v6e, 64 MiB per TC on v7x.
    try:
        info = pltpu.get_tpu_info()
        vmem_cap = int(getattr(info, "vmem_capacity_bytes", 0)) or (64 << 20)
    except Exception:
        vmem_cap = 64 << 20
    two_core = vmem_cap <= (64 << 20)          # v7x-like part: 2 TensorCores
    budget = int(vmem_cap * 0.6)

    BF16, F32 = 2, 4
    per_graph = (2 * N * N * BF16              # adj double buffer (bf16)
                 + 2 * N * in_dim * BF16       # x double buffer (bf16)
                 + 2 * nc_p * F32              # out double buffer
                 + N * N * F32                 # f32 degree working set
                 + 2 * N * in_dim * F32        # x_scaled + agg
                 + N * out_dim * F32)          # h
    w_bytes = 2 * (in_dim * out_dim * BF16 + out_dim * F32
                   + out_dim * nc_p * F32 + nc_p * F32)
    tb_max = max(_SUBLANE, int((budget - w_bytes) // per_graph))

    tb = min(tb_target, tb_max, _round_up(B, _SUBLANE))
    tb = max(_SUBLANE, (tb // _SUBLANE) * _SUBLANE)
    b_pad = _round_up(B, tb)

    # Only force >= 2 grid steps on 2-TC parts (megacore sharding); on 1-TC
    # chips shrinking tb just doubles per-step overhead for no benefit.
    if two_core:
        while b_pad // tb < 2 and tb > _SUBLANE:
            tb -= _SUBLANE
            b_pad = _round_up(B, tb)

    # HBM inputs: adj / x in bf16 (half the DMA bytes), unpadded feature dim.
    adj_b = adj.astype(jnp.bfloat16)
    x_b = x.astype(jnp.bfloat16)
    if b_pad > B:
        adj_b = _pad_to(adj_b, (b_pad, N, N))
        x_b = _pad_to(x_b, (b_pad, N, in_dim))

    w1_b = w1.astype(jnp.bfloat16)                                 # (in, out)
    b1_f = b1.reshape(1, -1).astype(jnp.float32)                   # (1, out)
    w2_f = _pad_to(w2.astype(jnp.float32), (out_dim, nc_p))        # (out, nc_p)
    b2_f = _pad_to(b2.reshape(1, -1).astype(jnp.float32), (1, nc_p))

    cost = pl.CostEstimate(
        flops=2 * b_pad * (N * N * in_dim + N * in_dim * out_dim
                           + out_dim * n_classes),
        transcendentals=2 * b_pad * N,                             # rsqrt per node
        bytes_accessed=(adj_b.size * BF16 + x_b.size * BF16
                        + w1_b.size * BF16 + b1_f.size * F32
                        + w2_f.size * F32 + b2_f.size * F32
                        + b_pad * nc_p * F32))

    out = pl.pallas_call(
        gc_gcn_kernel,
        out_shape=jax.ShapeDtypeStruct((b_pad, nc_p), jnp.float32),
        grid_spec=pltpu.PrefetchScalarGridSpec(
            num_scalar_prefetch=0,
            grid=(b_pad // tb,),
            in_specs=[
                pl.BlockSpec((tb, N, N), lambda b: (b, 0, 0)),
                pl.BlockSpec((tb, N, in_dim), lambda b: (b, 0, 0)),
                pl.BlockSpec((in_dim, out_dim), lambda b: (0, 0)),
                pl.BlockSpec((1, out_dim), lambda b: (0, 0)),
                pl.BlockSpec((out_dim, nc_p), lambda b: (0, 0)),
                pl.BlockSpec((1, nc_p), lambda b: (0, 0)),
            ],
            out_specs=pl.BlockSpec((tb, nc_p), lambda b: (b, 0)),
        ),
        compiler_params=pltpu.CompilerParams(
            dimension_semantics=("parallel",),
            vmem_limit_bytes=int(min(int(vmem_cap * 0.75), 96 << 20))),
        cost_estimate=cost,
    )(adj_b, x_b, w1_b, b1_f, w2_f, b2_f)

    # Slice off batch padding and padded class columns.
    return out[:B, :n_classes]


def gc_gcn_reference(adj, x, w1, b1, w2, b2):
    in_deg = jnp.sum(adj, axis=2, keepdims=True)
    out_deg = jnp.sum(adj, axis=1, keepdims=True)
    a_hat = adj * jax.lax.rsqrt(jnp.maximum(in_deg, 1.0)) \
                * jax.lax.rsqrt(jnp.maximum(out_deg, 1.0))
    h = jnp.maximum(jnp.einsum("bij,bjf->bif", a_hat, x) @ w1 + b1, 0.0)
    pooled = jnp.mean(h, axis=1)
    return pooled @ w2 + b2


if __name__ == "__main__":
    # Small, forward-consistent shapes: 2 graphs, 16 nodes each.
    B, N = 2, 16
    in_dim, out_dim, n_classes = 8, 32, 4

    key = jax.random.PRNGKey(0)
    k_adj, k_x, k_w1, k_b1, k_w2, k_b2 = jax.random.split(key, 6)

    # Random directed graphs (0/1 adjacency, row = destination), node features.
    adj = jax.random.bernoulli(k_adj, p=0.3, shape=(B, N, N)).astype(jnp.float32)
    x = jax.random.normal(k_x, (B, N, in_dim), dtype=jnp.float32)

    # Synthetic parameters (GraphConv weight/bias, Linear weight/bias).
    w1 = jax.random.normal(k_w1, (in_dim, out_dim), dtype=jnp.float32) * 0.1
    b1 = jax.random.normal(k_b1, (1, out_dim), dtype=jnp.float32) * 0.1
    w2 = jax.random.normal(k_w2, (out_dim, n_classes), dtype=jnp.float32) * 0.1
    b2 = jax.random.normal(k_b2, (1, n_classes), dtype=jnp.float32) * 0.1

    out = jax.block_until_ready(gc_gcn_forward(adj, x, w1, b1, w2, b2))
    ref = gc_gcn_reference(adj, x, w1, b1, w2, b2)

    assert out.shape == (B, n_classes)
    # bf16 operands (f32 accumulate) in the kernel vs. an all-f32 reference.
    assert jnp.allclose(out, ref, atol=2e-2, rtol=2e-2)

    print("KERNEL_OK")
</pallas_src>

<mosaic_0001>
module attributes {stable_mosaic.version = 11 : i64} {
  func.func @gc_gcn_kernel(%arg0: i32, %arg1: memref<8x16x16xbf16, #tpu.memory_space<vmem>>, %arg2: memref<8x16x8xbf16, #tpu.memory_space<vmem>>, %arg3: memref<8x32xbf16, #tpu.memory_space<vmem>>, %arg4: memref<1x32xf32, #tpu.memory_space<vmem>>, %arg5: memref<32x128xf32, #tpu.memory_space<vmem>>, %arg6: memref<1x128xf32, #tpu.memory_space<vmem>>, %arg7: memref<8x128xf32, #tpu.memory_space<vmem>>) attributes {dimension_semantics = [#tpu.dimension_semantics<parallel>], iteration_bounds = array<i64: 1>, scalar_prefetch = 0 : i64, scratch_operands = 0 : i64, tpu.core_type = #tpu.core_type<tc>, window_params = [{transform_indices = @transform_0, window_bounds = array<i64: 8, 16, 16>}, {transform_indices = @transform_1, window_bounds = array<i64: 8, 16, 8>}, {pipeline_mode = #tpu.pipeline_mode<synchronous>, transform_indices = @transform_2, window_bounds = array<i64: 8, 32>}, {pipeline_mode = #tpu.pipeline_mode<synchronous>, transform_indices = @transform_3, window_bounds = array<i64: 1, 32>}, {pipeline_mode = #tpu.pipeline_mode<synchronous>, transform_indices = @transform_4, window_bounds = array<i64: 32, 128>}, {pipeline_mode = #tpu.pipeline_mode<synchronous>, transform_indices = @transform_5, window_bounds = array<i64: 1, 128>}, {transform_indices = @transform_6, window_bounds = array<i64: 8, 128>}]} {
    %c0 = arith.constant 0 : index
    %c0_0 = arith.constant 0 : index
    %c0_1 = arith.constant 0 : index
    %0 = vector.load %arg1[%c0, %c0_0, %c0_1] : memref<8x16x16xbf16, #tpu.memory_space<vmem>>, vector<8x16x16xbf16>
    %c0_2 = arith.constant 0 : index
    %c0_3 = arith.constant 0 : index
    %c0_4 = arith.constant 0 : index
    %1 = vector.load %arg2[%c0_2, %c0_3, %c0_4] : memref<8x16x8xbf16, #tpu.memory_space<vmem>>, vector<8x16x8xbf16>
    %2 = arith.extf %0 : vector<8x16x16xbf16> to vector<8x16x16xf32>
    %cst = arith.constant dense<0.000000e+00> : vector<8x16xf32>
    %3 = vector.multi_reduction <add>, %2, %cst [2] : vector<8x16x16xf32> to vector<8x16xf32>
    %4 = vector.shape_cast %3 : vector<8x16xf32> to vector<8x16x1xf32>
    %cst_5 = arith.constant 1.000000e+00 : f32
    %5 = vector.broadcast %cst_5 : f32 to vector<8x16x1xf32>
    %6 = arith.maximumf %4, %5 : vector<8x16x1xf32>
    %7 = math.rsqrt %6 : vector<8x16x1xf32>
    %8 = arith.extf %0 : vector<8x16x16xbf16> to vector<8x16x16xf32>
    %cst_6 = arith.constant dense<0.000000e+00> : vector<8x16xf32>
    %9 = vector.multi_reduction <add>, %8, %cst_6 [1] : vector<8x16x16xf32> to vector<8x16xf32>
    %10 = vector.shape_cast %9 : vector<8x16xf32> to vector<8x1x16xf32>
    %cst_7 = arith.constant 1.000000e+00 : f32
    %11 = vector.broadcast %cst_7 : f32 to vector<8x1x16xf32>
    %12 = arith.maximumf %10, %11 : vector<8x1x16xf32>
    %13 = math.rsqrt %12 : vector<8x1x16xf32>
    %14 = arith.extf %1 : vector<8x16x8xbf16> to vector<8x16x8xf32>
    %15 = vector.shape_cast %13 : vector<8x1x16xf32> to vector<8x16x1xf32>
    %16 = vector.broadcast %15 : vector<8x16x1xf32> to vector<8x16x8xf32>
    %17 = arith.mulf %14, %16 : vector<8x16x8xf32>
    %18 = arith.truncf %17 : vector<8x16x8xf32> to vector<8x16x8xbf16>
    "tpu.trace_start"() <{level = 10 : i32, message = "bij,bjf->bif"}> : () -> ()
    %cst_8 = arith.constant dense<0.000000e+00> : vector<8x16x8xf32>
    %19 = tpu.matmul %0, %18, %cst_8 {dimension_numbers = #tpu.dot_dimension_numbers<[2], [1], [1], [2], [0, 0, 0, 1, 1, 2], [0], [0]>} : vector<8x16x16xbf16>, vector<8x16x8xbf16>, vector<8x16x8xf32> -> vector<8x16x8xf32>
    "tpu.trace_stop"() : () -> ()
    %20 = vector.broadcast %7 : vector<8x16x1xf32> to vector<8x16x8xf32>
    %21 = arith.mulf %19, %20 : vector<8x16x8xf32>
    %22 = vector.shape_cast %21 : vector<8x16x8xf32> to vector<128x8xf32>
    %23 = arith.truncf %22 : vector<128x8xf32> to vector<128x8xbf16>
    %c0_9 = arith.constant 0 : index
    %c0_10 = arith.constant 0 : index
    %24 = vector.load %arg3[%c0_9, %c0_10] : memref<8x32xbf16, #tpu.memory_space<vmem>>, vector<8x32xbf16>
    %cst_11 = arith.constant dense<0.000000e+00> : vector<128x32xf32>
    %25 = tpu.matmul %23, %24, %cst_11 {dimension_numbers = #tpu.dot_dimension_numbers<[1], [0], [0], [1], [0, 0, 1, 1], [], []>} : vector<128x8xbf16>, vector<8x32xbf16>, vector<128x32xf32> -> vector<128x32xf32>
    %c0_12 = arith.constant 0 : index
    %c0_13 = arith.constant 0 : index
    %26 = vector.load %arg4[%c0_12, %c0_13] : memref<1x32xf32, #tpu.memory_space<vmem>>, vector<1x32xf32>
    %27 = vector.broadcast %26 : vector<1x32xf32> to vector<128x32xf32>
    %28 = arith.addf %25, %27 : vector<128x32xf32>
    %cst_14 = arith.constant 0.000000e+00 : f32
    %29 = vector.broadcast %cst_14 : f32 to vector<128x32xf32>
    %30 = arith.maximumf %28, %29 : vector<128x32xf32>
    %31 = vector.shape_cast %30 : vector<128x32xf32> to vector<8x16x32xf32>
    %cst_15 = arith.constant dense<0.000000e+00> : vector<8x32xf32>
    %32 = vector.multi_reduction <add>, %31, %cst_15 [1] : vector<8x16x32xf32> to vector<8x32xf32>
    %cst_16 = arith.constant 1.600000e+01 : f32
    %33 = vector.broadcast %cst_16 : f32 to vector<8x32xf32>
    %34 = arith.divf %32, %33 : vector<8x32xf32>
    %c0_17 = arith.constant 0 : index
    %c0_18 = arith.constant 0 : index
    %35 = vector.load %arg5[%c0_17, %c0_18] : memref<32x128xf32, #tpu.memory_space<vmem>>, vector<32x128xf32>
    %cst_19 = arith.constant dense<0.000000e+00> : vector<8x128xf32>
    %36 = tpu.matmul %34, %35, %cst_19 {dimension_numbers = #tpu.dot_dimension_numbers<[1], [0], [0], [1], [0, 0, 1, 1], [], []>} : vector<8x32xf32>, vector<32x128xf32>, vector<8x128xf32> -> vector<8x128xf32>
    %c0_20 = arith.constant 0 : index
    %c0_21 = arith.constant 0 : index
    %37 = vector.load %arg6[%c0_20, %c0_21] : memref<1x128xf32, #tpu.memory_space<vmem>>, vector<1x128xf32>
    %38 = vector.broadcast %37 : vector<1x128xf32> to vector<8x128xf32>
    %39 = arith.addf %36, %38 : vector<8x128xf32>
    %c0_22 = arith.constant 0 : index
    %c0_23 = arith.constant 0 : index
    %40 = vector.load %arg7[%c0_22, %c0_23] : memref<8x128xf32, #tpu.memory_space<vmem>>, vector<8x128xf32>
    tpu.vector_store %arg7[%c0_22, %c0_23], %39 {strides = array<i32>} : memref<8x128xf32, #tpu.memory_space<vmem>>, vector<8x128xf32>,
    return
  }
  func.func @transform_0(%arg0: i32) -> (i32, i32, i32) {
    %c0_i32 = arith.constant 0 : i32
    %c0_i32_0 = arith.constant 0 : i32
    %c0_i32_1 = arith.constant 0 : i32
    return %arg0, %c0_i32, %c0_i32_0 : i32, i32, i32
  }
  func.func @transform_1(%arg0: i32) -> (i32, i32, i32) {
    %c0_i32 = arith.constant 0 : i32
    %c0_i32_0 = arith.constant 0 : i32
    %c0_i32_1 = arith.constant 0 : i32
    return %arg0, %c0_i32, %c0_i32_0 : i32, i32, i32
  }
  func.func @transform_2(%arg0: i32) -> (i32, i32) {
    %c0_i32 = arith.constant 0 : i32
    %c0_i32_0 = arith.constant 0 : i32
    %c0_i32_1 = arith.constant 0 : i32
    return %c0_i32, %c0_i32_0 : i32, i32
  }
  func.func @transform_3(%arg0: i32) -> (i32, i32) {
    %c0_i32 = arith.constant 0 : i32
    %c0_i32_0 = arith.constant 0 : i32
    %c0_i32_1 = arith.constant 0 : i32
    return %c0_i32, %c0_i32_0 : i32, i32
  }
  func.func @transform_4(%arg0: i32) -> (i32, i32) {
    %c0_i32 = arith.constant 0 : i32
    %c0_i32_0 = arith.constant 0 : i32
    %c0_i32_1 = arith.constant 0 : i32
    return %c0_i32, %c0_i32_0 : i32, i32
  }
  func.func @transform_5(%arg0: i32) -> (i32, i32) {
    %c0_i32 = arith.constant 0 : i32
    %c0_i32_0 = arith.constant 0 : i32
    %c0_i32_1 = arith.constant 0 : i32
    return %c0_i32, %c0_i32_0 : i32, i32
  }
  func.func @transform_6(%arg0: i32) -> (i32, i32) {
    %c0_i32 = arith.constant 0 : i32
    %c0_i32_0 = arith.constant 0 : i32
    return %arg0, %c0_i32 : i32, i32
  }
}

</mosaic_0001>

<llo_original>
// kernel: tpu_custom_call.1
$region0: #{tpu_custom_call.1}
  #allocation0 [shape = 'u32[]', space=smem, size = 0x4, offset = 0x4, fixed_abs, tag = 'smem constant byte address 0x4 - core index']
  #allocation1 [shape = 'u32[72,128]{1,0:T(1,128)}', space=vmem, size = 0x9000, scoped, tag = 'internal scratch']
  %s0 = inlined_call_operand.vmem [shape: bf16[8,16,16], index: 0, kind: input, shape index: {}]
  %s1 = inlined_call_operand.vmem [shape: bf16[8,16,8], index: 1, kind: input, shape index: {}]
  %s2 = inlined_call_operand.hbm [shape: bf16[8,32], index: 2, kind: input, shape index: {}]
  %s3 = inlined_call_operand.vmem [shape: f32[1,32], index: 3, kind: input, shape index: {}]
  %s4 = inlined_call_operand.vmem [shape: f32[32,128], index: 4, kind: input, shape index: {}]
  %s5 = inlined_call_operand.vmem [shape: f32[1,128], index: 5, kind: input, shape index: {}]
  %s6 = inlined_call_operand.hbm [shape: f32[8,128], index: 6, kind: output, shape index: {}]
  %s7 = sld [smem:[#allocation0]]
  $region38: #{tpu_custom_call.1} parent=0
    _
  %s9 = ssub.s32 1, %s7
  %s10 = scalar_select 0, %s9, %s7
  $region1: #{tpu_custom_call.1} parent=0
    #allocation2 [shape = 'u8[2048]{0}', space=vmem, size = 0x800, scoped, tag = 'input window, operand 2, single buffered']
    #allocation3 [shape = 's32[1]{0}', space=sflag, size = 0x4, scoped, tag = 'scoped memory for tpu_custom_call.1']
    #allocation4 [shape = 's32[1]{0}', space=sflag, size = 0x4, scoped, tag = 'scoped memory for tpu_custom_call.1']
    #allocation5 [shape = 'u8[4096]{0}', space=vmem, size = 0x1000, scoped, tag = 'output window, operand 0, single buffered']
    %11 = vsyncpa [#allocation3], 0
    %12 = vsyncpa [#allocation4], 0
    // Predicated region
    $region2: #{tpu_custom_call.1} parent=1 // pred_check
      _
    $region3: #{tpu_custom_call.1} parent=1 // pred_check_branch
      %14 = sbr.rel (0) target = $region5
    $region4: #{tpu_custom_call.1} parent=1 // pred_region
      _
    $region5: #{tpu_custom_call.1} parent=1 // pred_fallthru
      _
    // Predicated region
    $region6: #{tpu_custom_call.1} parent=1 // pred_check
      _
    $region7: #{tpu_custom_call.1} parent=1 // pred_check_branch
      %16 = sbr.rel (0) target = $region9
    $region8: #{tpu_custom_call.1} parent=1 // pred_region
      _
    $region9: #{tpu_custom_call.1} parent=1 // pred_fallthru
      _
    // Predicated region
    $region10: #{tpu_custom_call.1} parent=1 // pred_check
      _
    $region11: #{tpu_custom_call.1} parent=1 // pred_check_branch
      %18 = sbr.rel (0) target = $region13
    $region12: #{tpu_custom_call.1} parent=1 // pred_region
      %20 = vsyncadd [#allocation3], 0
      %s22 = sshll.u32 %s2, 4
      %s23 = int_to_ptr.hbm [resolvable:$true] %s22
      %s24 = sshll.u32 [#allocation2], 4
      %s25 = int_to_ptr.vmem [resolvable:$true] %s24
      %27 = dma.hbm_to_vmem [thread:$0]  %s23, 64, %s25, [#allocation3]
    $region13: #{tpu_custom_call.1} parent=1 // pred_fallthru
      _
    // Predicated region
    $region14: #{tpu_custom_call.1} parent=1 // pred_check
      _
    $region15: #{tpu_custom_call.1} parent=1 // pred_check_branch
      %29 = sbr.rel (0) target = $region17
    $region16: #{tpu_custom_call.1} parent=1 // pred_region
      _
    $region17: #{tpu_custom_call.1} parent=1 // pred_fallthru
      _
    // Predicated region
    $region18: #{tpu_custom_call.1} parent=1 // pred_check
      _
    $region19: #{tpu_custom_call.1} parent=1 // pred_check_branch
      %31 = sbr.rel (0) target = $region21
    $region20: #{tpu_custom_call.1} parent=1 // pred_region
      _
    $region21: #{tpu_custom_call.1} parent=1 // pred_fallthru
      _
    // Predicated region
    $region22: #{tpu_custom_call.1} parent=1 // pred_check
      _
    $region23: #{tpu_custom_call.1} parent=1 // pred_check_branch
      %33 = sbr.rel (0) target = $region25
    $region24: #{tpu_custom_call.1} parent=1 // pred_region
      _
    $region25: #{tpu_custom_call.1} parent=1 // pred_fallthru
      _
    // Predicated region
    $region26: #{tpu_custom_call.1} parent=1 // pred_check
      _
    $region27: #{tpu_custom_call.1} parent=1 // pred_check_branch
      %35 = sbr.rel (0) target = $region29
    $region28: #{tpu_custom_call.1} parent=1 // pred_region
      %37 = dma.done [#allocation3], 64
    $region29: #{tpu_custom_call.1} parent=1 // pred_fallthru
      _
    %v39 = vld [vmem:[%s0] sm:$0xf]
    %v40 = vld [vmem:[%s0 + $0x4] sm:$0xf]
    %v41 = vld [vmem:[%s0 + $0x8] sm:$0xf]
    %v42 = vld [vmem:[%s0 + $0xc] sm:$0xf]
    %v43 = vld [vmem:[%s0 + $0x10] sm:$0xf]
    %v44 = vld [vmem:[%s0 + $0x14] sm:$0xf]
    %v45 = vld [vmem:[%s0 + $0x18] sm:$0xf]
    %v46 = vld [vmem:[%s0 + $0x1c] sm:$0xf]
    %v47 = vld [vmem:[%s0 + $0x20] sm:$0xf]
    %v48 = vld [vmem:[%s0 + $0x24] sm:$0xf]
    %v49 = vld [vmem:[%s0 + $0x28] sm:$0xf]
    %v50 = vld [vmem:[%s0 + $0x2c] sm:$0xf]
    %v51 = vld [vmem:[%s0 + $0x30] sm:$0xf]
    %v52 = vld [vmem:[%s0 + $0x34] sm:$0xf]
    %v53 = vld [vmem:[%s0 + $0x38] sm:$0xf]
    %v54 = vld [vmem:[%s0 + $0x3c] sm:$0xf]
    %v55 = vld [vmem:[%s1] sm:$0xf]
    %v56 = vld [vmem:[%s1 + $0x4] sm:$0xf]
    %v57 = vld [vmem:[%s1 + $0x8] sm:$0xf]
    %v58 = vld [vmem:[%s1 + $0xc] sm:$0xf]
    %v59 = vld [vmem:[%s1 + $0x10] sm:$0xf]
    %v60 = vld [vmem:[%s1 + $0x14] sm:$0xf]
    %v61 = vld [vmem:[%s1 + $0x18] sm:$0xf]
    %v62 = vld [vmem:[%s1 + $0x1c] sm:$0xf]
    %v63 = vld [vmem:[%s1 + $0x20] sm:$0xf]
    %v64 = vld [vmem:[%s1 + $0x24] sm:$0xf]
    %v65 = vld [vmem:[%s1 + $0x28] sm:$0xf]
    %v66 = vld [vmem:[%s1 + $0x2c] sm:$0xf]
    %v67 = vld [vmem:[%s1 + $0x30] sm:$0xf]
    %v68 = vld [vmem:[%s1 + $0x34] sm:$0xf]
    %v69 = vld [vmem:[%s1 + $0x38] sm:$0xf]
    %v70 = vld [vmem:[%s1 + $0x3c] sm:$0xf]
    %v71 = vunpack.c.l.bf16 %v39
    %v72 = vunpack.c.l.bf16 %v40
    %v73 = vunpack.c.l.bf16 %v41
    %v74 = vunpack.c.l.bf16 %v42
    %v75 = vunpack.c.l.bf16 %v43
    %v76 = vunpack.c.l.bf16 %v44
    %v77 = vunpack.c.l.bf16 %v45
    %v78 = vunpack.c.l.bf16 %v46
    %v79 = vunpack.c.l.bf16 %v47
    %v80 = vunpack.c.l.bf16 %v48
    %v81 = vunpack.c.l.bf16 %v49
    %v82 = vunpack.c.l.bf16 %v50
    %v83 = vunpack.c.l.bf16 %v51
    %v84 = vunpack.c.l.bf16 %v52
    %v85 = vunpack.c.l.bf16 %v53
    %v86 = vunpack.c.l.bf16 %v54
    %vm87 = vcmask 130048
    %v88 = vsel %vm87, %v71, 0.0
    %89 = vadd.xlane.f32.xlu0 %v88
    %v90 = vpop.xlane.xlu0 %89
    %v91 = vsel %vm87, %v72, 0.0
    %92 = vadd.xlane.f32.xlu0 %v91
    %v93 = vpop.xlane.xlu0 %92
    %v94 = vsel %vm87, %v73, 0.0
    %95 = vadd.xlane.f32.xlu0 %v94
    %v96 = vpop.xlane.xlu0 %95
    %v97 = vsel %vm87, %v74, 0.0
    %98 = vadd.xlane.f32.xlu0 %v97
    %v99 = vpop.xlane.xlu0 %98
    %v100 = vsel %vm87, %v75, 0.0
    %101 = vadd.xlane.f32.xlu0 %v100
    %v102 = vpop.xlane.xlu0 %101
    %v103 = vsel %vm87, %v76, 0.0
    %104 = vadd.xlane.f32.xlu0 %v103
    %v105 = vpop.xlane.xlu0 %104
    %v106 = vsel %vm87, %v77, 0.0
    %107 = vadd.xlane.f32.xlu0 %v106
    %v108 = vpop.xlane.xlu0 %107
    %v109 = vsel %vm87, %v78, 0.0
    %110 = vadd.xlane.f32.xlu0 %v109
    %v111 = vpop.xlane.xlu0 %110
    %v112 = vsel %vm87, %v79, 0.0
    %113 = vadd.xlane.f32.xlu0 %v112
    %v114 = vpop.xlane.xlu0 %113
    %v115 = vsel %vm87, %v80, 0.0
    %116 = vadd.xlane.f32.xlu0 %v115
    %v117 = vpop.xlane.xlu0 %116
    %v118 = vsel %vm87, %v81, 0.0
    %119 = vadd.xlane.f32.xlu0 %v118
    %v120 = vpop.xlane.xlu0 %119
    %v121 = vsel %vm87, %v82, 0.0
    %122 = vadd.xlane.f32.xlu0 %v121
    %v123 = vpop.xlane.xlu0 %122
    %v124 = vsel %vm87, %v83, 0.0
    %125 = vadd.xlane.f32.xlu0 %v124
    %v126 = vpop.xlane.xlu0 %125
    %v127 = vsel %vm87, %v84, 0.0
    %128 = vadd.xlane.f32.xlu0 %v127
    %v129 = vpop.xlane.xlu0 %128
    %v130 = vsel %vm87, %v85, 0.0
    %131 = vadd.xlane.f32.xlu0 %v130
    %v132 = vpop.xlane.xlu0 %131
    %v133 = vsel %vm87, %v86, 0.0
    %134 = vadd.xlane.f32.xlu0 %v133
    %v135 = vpop.xlane.xlu0 %134
    %v136 = vmax.f32 %v90, 1.0
    %v137 = vmax.f32 %v93, 1.0
    %v138 = vmax.f32 %v96, 1.0
    %v139 = vmax.f32 %v99, 1.0
    %v140 = vmax.f32 %v102, 1.0
    %v141 = vmax.f32 %v105, 1.0
    %v142 = vmax.f32 %v108, 1.0
    %v143 = vmax.f32 %v111, 1.0
    %v144 = vmax.f32 %v114, 1.0
    %v145 = vmax.f32 %v117, 1.0
    %v146 = vmax.f32 %v120, 1.0
    %v147 = vmax.f32 %v123, 1.0
    %v148 = vmax.f32 %v126, 1.0
    %v149 = vmax.f32 %v129, 1.0
    %v150 = vmax.f32 %v132, 1.0
    %v151 = vmax.f32 %v135, 1.0
    %v152 = vrsqrt.pop %v136
    %v153 = vmul.f32 %v152, %v136
    %v154 = vmul.f32 %v153, %v152
    %v155 = vmul.f32 0.5, %v154
    %v156 = vsub.f32 1.5, %v155
    %v157 = vmul.f32 %v152, %v156
    %vm158 = vweird.f32 %v136
    %vm159 = vweird.f32 %v152
    %vm160 = vmor %vm158, %vm159
    %v161 = vsel %vm160, %v152, %v157
    %v162 = vrsqrt.pop %v137
    %v163 = vmul.f32 %v162, %v137
    %v164 = vmul.f32 %v163, %v162
    %v165 = vmul.f32 0.5, %v164
    %v166 = vsub.f32 1.5, %v165
    %v167 = vmul.f32 %v162, %v166
    %vm168 = vweird.f32 %v137
    %vm169 = vweird.f32 %v162
    %vm170 = vmor %vm168, %vm169
    %v171 = vsel %vm170, %v162, %v167
    %v172 = vrsqrt.pop %v138
    %v173 = vmul.f32 %v172, %v138
    %v174 = vmul.f32 %v173, %v172
    %v175 = vmul.f32 0.5, %v174
    %v176 = vsub.f32 1.5, %v175
    %v177 = vmul.f32 %v172, %v176
    %vm178 = vweird.f32 %v138
    %vm179 = vweird.f32 %v172
    %vm180 = vmor %vm178, %vm179
    %v181 = vsel %vm180, %v172, %v177
    %v182 = vrsqrt.pop %v139
    %v183 = vmul.f32 %v182, %v139
    %v184 = vmul.f32 %v183, %v182
    %v185 = vmul.f32 0.5, %v184
    %v186 = vsub.f32 1.5, %v185
    %v187 = vmul.f32 %v182, %v186
    %vm188 = vweird.f32 %v139
    %vm189 = vweird.f32 %v182
    %vm190 = vmor %vm188, %vm189
    %v191 = vsel %vm190, %v182, %v187
    %v192 = vrsqrt.pop %v140
    %v193 = vmul.f32 %v192, %v140
    %v194 = vmul.f32 %v193, %v192
    %v195 = vmul.f32 0.5, %v194
    %v196 = vsub.f32 1.5, %v195
    %v197 = vmul.f32 %v192, %v196
    %vm198 = vweird.f32 %v140
    %vm199 = vweird.f32 %v192
    %vm200 = vmor %vm198, %vm199
    %v201 = vsel %vm200, %v192, %v197
    %v202 = vrsqrt.pop %v141
    %v203 = vmul.f32 %v202, %v141
    %v204 = vmul.f32 %v203, %v202
    %v205 = vmul.f32 0.5, %v204
    %v206 = vsub.f32 1.5, %v205
    %v207 = vmul.f32 %v202, %v206
    %vm208 = vweird.f32 %v141
    %vm209 = vweird.f32 %v202
    %vm210 = vmor %vm208, %vm209
    %v211 = vsel %vm210, %v202, %v207
    %v212 = vrsqrt.pop %v142
    %v213 = vmul.f32 %v212, %v142
    %v214 = vmul.f32 %v213, %v212
    %v215 = vmul.f32 0.5, %v214
    %v216 = vsub.f32 1.5, %v215
    %v217 = vmul.f32 %v212, %v216
    %vm218 = vweird.f32 %v142
    %vm219 = vweird.f32 %v212
    %vm220 = vmor %vm218, %vm219
    %v221 = vsel %vm220, %v212, %v217
    %v222 = vrsqrt.pop %v143
    %v223 = vmul.f32 %v222, %v143
    %v224 = vmul.f32 %v223, %v222
    %v225 = vmul.f32 0.5, %v224
    %v226 = vsub.f32 1.5, %v225
    %v227 = vmul.f32 %v222, %v226
    %vm228 = vweird.f32 %v143
    %vm229 = vweird.f32 %v222
    %vm230 = vmor %vm228, %vm229
    %v231 = vsel %vm230, %v222, %v227
    %v232 = vrsqrt.pop %v144
    %v233 = vmul.f32 %v232, %v144
    %v234 = vmul.f32 %v233, %v232
    %v235 = vmul.f32 0.5, %v234
    %v236 = vsub.f32 1.5, %v235
    %v237 = vmul.f32 %v232, %v236
    %vm238 = vweird.f32 %v144
    %vm239 = vweird.f32 %v232
    %vm240 = vmor %vm238, %vm239
    %v241 = vsel %vm240, %v232, %v237
    %v242 = vrsqrt.pop %v145
    %v243 = vmul.f32 %v242, %v145
    %v244 = vmul.f32 %v243, %v242
    %v245 = vmul.f32 0.5, %v244
    %v246 = vsub.f32 1.5, %v245
    %v247 = vmul.f32 %v242, %v246
    %vm248 = vweird.f32 %v145
    %vm249 = vweird.f32 %v242
    %vm250 = vmor %vm248, %vm249
    %v251 = vsel %vm250, %v242, %v247
    %v252 = vrsqrt.pop %v146
    %v253 = vmul.f32 %v252, %v146
    %v254 = vmul.f32 %v253, %v252
    %v255 = vmul.f32 0.5, %v254
    %v256 = vsub.f32 1.5, %v255
    %v257 = vmul.f32 %v252, %v256
    %vm258 = vweird.f32 %v146
    %vm259 = vweird.f32 %v252
    %vm260 = vmor %vm258, %vm259
    %v261 = vsel %vm260, %v252, %v257
    %v262 = vrsqrt.pop %v147
    %v263 = vmul.f32 %v262, %v147
    %v264 = vmul.f32 %v263, %v262
    %v265 = vmul.f32 0.5, %v264
    %v266 = vsub.f32 1.5, %v265
    %v267 = vmul.f32 %v262, %v266
    %vm268 = vweird.f32 %v147
    %vm269 = vweird.f32 %v262
    %vm270 = vmor %vm268, %vm269
    %v271 = vsel %vm270, %v262, %v267
    %v272 = vrsqrt.pop %v148
    %v273 = vmul.f32 %v272, %v148
    %v274 = vmul.f32 %v273, %v272
    %v275 = vmul.f32 0.5, %v274
    %v276 = vsub.f32 1.5, %v275
    %v277 = vmul.f32 %v272, %v276
    %vm278 = vweird.f32 %v148
    %vm279 = vweird.f32 %v272
    %vm280 = vmor %vm278, %vm279
    %v281 = vsel %vm280, %v272, %v277
    %v282 = vrsqrt.pop %v149
    %v283 = vmul.f32 %v282, %v149
    %v284 = vmul.f32 %v283, %v282
    %v285 = vmul.f32 0.5, %v284
    %v286 = vsub.f32 1.5, %v285
    %v287 = vmul.f32 %v282, %v286
    %vm288 = vweird.f32 %v149
    %vm289 = vweird.f32 %v282
    %vm290 = vmor %vm288, %vm289
    %v291 = vsel %vm290, %v282, %v287
    %v292 = vrsqrt.pop %v150
    %v293 = vmul.f32 %v292, %v150
    %v294 = vmul.f32 %v293, %v292
    %v295 = vmul.f32 0.5, %v294
    %v296 = vsub.f32 1.5, %v295
    %v297 = vmul.f32 %v292, %v296
    %vm298 = vweird.f32 %v150
    %vm299 = vweird.f32 %v292
    %vm300 = vmor %vm298, %vm299
    %v301 = vsel %vm300, %v292, %v297
    %v302 = vrsqrt.pop %v151
    %v303 = vmul.f32 %v302, %v151
    %v304 = vmul.f32 %v303, %v302
    %v305 = vmul.f32 0.5, %v304
    %v306 = vsub.f32 1.5, %v305
    %v307 = vmul.f32 %v302, %v306
    %vm308 = vweird.f32 %v151
    %vm309 = vweird.f32 %v302
    %vm310 = vmor %vm308, %vm309
    %v311 = vsel %vm310, %v302, %v307
    %v312 = vadd.f32 %v88, %v91
    %v313 = vrot.slane %v312, 4
    %v314 = vadd.f32 %v312, %v313
    %v315 = vrot.slane %v314, 2
    %v316 = vadd.f32 %v314, %v315
    %v317 = vrot.slane %v316, 1
    %v318 = vadd.f32 %v316, %v317
    %v319 = vadd.f32 %v94, %v97
    %v320 = vrot.slane %v319, 4
    %v321 = vadd.f32 %v319, %v320
    %v322 = vrot.slane %v321, 2
    %v323 = vadd.f32 %v321, %v322
    %v324 = vrot.slane %v323, 1
    %v325 = vadd.f32 %v323, %v324
    %v326 = vadd.f32 %v100, %v103
    %v327 = vrot.slane %v326, 4
    %v328 = vadd.f32 %v326, %v327
    %v329 = vrot.slane %v328, 2
    %v330 = vadd.f32 %v328, %v329
    %v331 = vrot.slane %v330, 1
    %v332 = vadd.f32 %v330, %v331
    %v333 = vadd.f32 %v106, %v109
    %v334 = vrot.slane %v333, 4
    %v335 = vadd.f32 %v333, %v334
    %v336 = vrot.slane %v335, 2
    %v337 = vadd.f32 %v335, %v336
    %v338 = vrot.slane %v337, 1
    %v339 = vadd.f32 %v337, %v338
    %v340 = vadd.f32 %v112, %v115
    %v341 = vrot.slane %v340, 4
    %v342 = vadd.f32 %v340, %v341
    %v343 = vrot.slane %v342, 2
    %v344 = vadd.f32 %v342, %v343
    %v345 = vrot.slane %v344, 1
    %v346 = vadd.f32 %v344, %v345
    %v347 = vadd.f32 %v118, %v121
    %v348 = vrot.slane %v347, 4
    %v349 = vadd.f32 %v347, %v348
    %v350 = vrot.slane %v349, 2
    %v351 = vadd.f32 %v349, %v350
    %v352 = vrot.slane %v351, 1
    %v353 = vadd.f32 %v351, %v352
    %v354 = vadd.f32 %v124, %v127
    %v355 = vrot.slane %v354, 4
    %v356 = vadd.f32 %v354, %v355
    %v357 = vrot.slane %v356, 2
    %v358 = vadd.f32 %v356, %v357
    %v359 = vrot.slane %v358, 1
    %v360 = vadd.f32 %v358, %v359
    %v361 = vadd.f32 %v130, %v133
    %v362 = vrot.slane %v361, 4
    %v363 = vadd.f32 %v361, %v362
    %v364 = vrot.slane %v363, 2
    %v365 = vadd.f32 %v363, %v364
    %v366 = vrot.slane %v365, 1
    %v367 = vadd.f32 %v365, %v366
    %v368 = vmax.f32 %v318, 1.0
    %v369 = vmax.f32 %v325, 1.0
    %v370 = vmax.f32 %v332, 1.0
    %v371 = vmax.f32 %v339, 1.0
    %v372 = vmax.f32 %v346, 1.0
    %v373 = vmax.f32 %v353, 1.0
    %v374 = vmax.f32 %v360, 1.0
    %v375 = vmax.f32 %v367, 1.0
    %v376 = vrsqrt.pop %v368
    %v377 = vmul.f32 %v376, %v368
    %v378 = vmul.f32 %v377, %v376
    %v379 = vmul.f32 0.5, %v378
    %v380 = vsub.f32 1.5, %v379
    %v381 = vmul.f32 %v376, %v380
    %vm382 = vweird.f32 %v368
    %vm383 = vweird.f32 %v376
    %vm384 = vmor %vm382, %vm383
    %v385 = vsel %vm384, %v376, %v381
    %v386 = vrsqrt.pop %v369
    %v387 = vmul.f32 %v386, %v369
    %v388 = vmul.f32 %v387, %v386
    %v389 = vmul.f32 0.5, %v388
    %v390 = vsub.f32 1.5, %v389
    %v391 = vmul.f32 %v386, %v390
    %vm392 = vweird.f32 %v369
    %vm393 = vweird.f32 %v386
    %vm394 = vmor %vm392, %vm393
    %v395 = vsel %vm394, %v386, %v391
    %v396 = vrsqrt.pop %v370
    %v397 = vmul.f32 %v396, %v370
    %v398 = vmul.f32 %v397, %v396
    %v399 = vmul.f32 0.5, %v398
    %v400 = vsub.f32 1.5, %v399
    %v401 = vmul.f32 %v396, %v400
    %vm402 = vweird.f32 %v370
    %vm403 = vweird.f32 %v396
    %vm404 = vmor %vm402, %vm403
    %v405 = vsel %vm404, %v396, %v401
    %v406 = vrsqrt.pop %v371
    %v407 = vmul.f32 %v406, %v371
    %v408 = vmul.f32 %v407, %v406
    %v409 = vmul.f32 0.5, %v408
    %v410 = vsub.f32 1.5, %v409
    %v411 = vmul.f32 %v406, %v410
    %vm412 = vweird.f32 %v371
    %vm413 = vweird.f32 %v406
    %vm414 = vmor %vm412, %vm413
    %v415 = vsel %vm414, %v406, %v411
    %v416 = vrsqrt.pop %v372
    %v417 = vmul.f32 %v416, %v372
    %v418 = vmul.f32 %v417, %v416
    %v419 = vmul.f32 0.5, %v418
    %v420 = vsub.f32 1.5, %v419
    %v421 = vmul.f32 %v416, %v420
    %vm422 = vweird.f32 %v372
    %vm423 = vweird.f32 %v416
    %vm424 = vmor %vm422, %vm423
    %v425 = vsel %vm424, %v416, %v421
    %v426 = vrsqrt.pop %v373
    %v427 = vmul.f32 %v426, %v373
    %v428 = vmul.f32 %v427, %v426
    %v429 = vmul.f32 0.5, %v428
    %v430 = vsub.f32 1.5, %v429
    %v431 = vmul.f32 %v426, %v430
    %vm432 = vweird.f32 %v373
    %vm433 = vweird.f32 %v426
    %vm434 = vmor %vm432, %vm433
    %v435 = vsel %vm434, %v426, %v431
    %v436 = vrsqrt.pop %v374
    %v437 = vmul.f32 %v436, %v374
    %v438 = vmul.f32 %v437, %v436
    %v439 = vmul.f32 0.5, %v438
    %v440 = vsub.f32 1.5, %v439
    %v441 = vmul.f32 %v436, %v440
    %vm442 = vweird.f32 %v374
    %vm443 = vweird.f32 %v436
    %vm444 = vmor %vm442, %vm443
    %v445 = vsel %vm444, %v436, %v441
    %v446 = vrsqrt.pop %v375
    %v447 = vmul.f32 %v446, %v375
    %v448 = vmul.f32 %v447, %v446
    %v449 = vmul.f32 0.5, %v448
    %v450 = vsub.f32 1.5, %v449
    %v451 = vmul.f32 %v446, %v450
    %vm452 = vweird.f32 %v375
    %vm453 = vweird.f32 %v446
    %vm454 = vmor %vm452, %vm453
    %v455 = vsel %vm454, %v446, %v451
    %v456 = vunpack.c.l.bf16 %v55
    %v457 = vunpack.c.l.bf16 %v56
    %v458 = vunpack.c.l.bf16 %v57
    %v459 = vunpack.c.l.bf16 %v58
    %v460 = vunpack.c.l.bf16 %v59
    %v461 = vunpack.c.l.bf16 %v60
    %v462 = vunpack.c.l.bf16 %v61
    %v463 = vunpack.c.l.bf16 %v62
    %v464 = vunpack.c.l.bf16 %v63
    %v465 = vunpack.c.l.bf16 %v64
    %v466 = vunpack.c.l.bf16 %v65
    %v467 = vunpack.c.l.bf16 %v66
    %v468 = vunpack.c.l.bf16 %v67
    %v469 = vunpack.c.l.bf16 %v68
    %v470 = vunpack.c.l.bf16 %v69
    %v471 = vunpack.c.l.bf16 %v70
    %v472 = vlaneseq
    %v473 = vshrl.u32 %v472, 7
    %475 = vset.pattern.permute.xlu0 %v473
    %476 = vperm.xlu0 %475, %v385
    %v477 = vpop.permute.xlu0 %476
    %v478 = vlaneseq
    %v479 = vshrl.u32 %v478, 7
    %v480 = vadd.s32 %v479, 8
    %481 = vset.pattern.permute.xlu0 %v480
    %482 = vperm.xlu0 %481, %v385
    %v483 = vpop.permute.xlu0 %482
    %v484 = vlaneseq
    %v485 = vshrl.u32 %v484, 7
    %487 = vset.pattern.permute.xlu0 %v485
    %488 = vperm.xlu0 %487, %v395
    %v489 = vpop.permute.xlu0 %488
    %v490 = vlaneseq
    %v491 = vshrl.u32 %v490, 7
    %v492 = vadd.s32 %v491, 8
    %493 = vset.pattern.permute.xlu0 %v492
    %494 = vperm.xlu0 %493, %v395
    %v495 = vpop.permute.xlu0 %494
    %v496 = vlaneseq
    %v497 = vshrl.u32 %v496, 7
    %499 = vset.pattern.permute.xlu0 %v497
    %500 = vperm.xlu0 %499, %v405
    %v501 = vpop.permute.xlu0 %500
    %v502 = vlaneseq
    %v503 = vshrl.u32 %v502, 7
    %v504 = vadd.s32 %v503, 8
    %505 = vset.pattern.permute.xlu0 %v504
    %506 = vperm.xlu0 %505, %v405
    %v507 = vpop.permute.xlu0 %506
    %v508 = vlaneseq
    %v509 = vshrl.u32 %v508, 7
    %511 = vset.pattern.permute.xlu0 %v509
    %512 = vperm.xlu0 %511, %v415
    %v513 = vpop.permute.xlu0 %512
    %v514 = vlaneseq
    %v515 = vshrl.u32 %v514, 7
    %v516 = vadd.s32 %v515, 8
    %517 = vset.pattern.permute.xlu0 %v516
    %518 = vperm.xlu0 %517, %v415
    %v519 = vpop.permute.xlu0 %518
    %v520 = vlaneseq
    %v521 = vshrl.u32 %v520, 7
    %523 = vset.pattern.permute.xlu0 %v521
    %524 = vperm.xlu0 %523, %v425
    %v525 = vpop.permute.xlu0 %524
    %v526 = vlaneseq
    %v527 = vshrl.u32 %v526, 7
    %v528 = vadd.s32 %v527, 8
    %529 = vset.pattern.permute.xlu0 %v528
    %530 = vperm.xlu0 %529, %v425
    %v531 = vpop.permute.xlu0 %530
    %v532 = vlaneseq
    %v533 = vshrl.u32 %v532, 7
    %535 = vset.pattern.permute.xlu0 %v533
    %536 = vperm.xlu0 %535, %v435
    %v537 = vpop.permute.xlu0 %536
    %v538 = vlaneseq
    %v539 = vshrl.u32 %v538, 7
    %v540 = vadd.s32 %v539, 8
    %541 = vset.pattern.permute.xlu0 %v540
    %542 = vperm.xlu0 %541, %v435
    %v543 = vpop.permute.xlu0 %542
    %v544 = vlaneseq
    %v545 = vshrl.u32 %v544, 7
    %547 = vset.pattern.permute.xlu0 %v545
    %548 = vperm.xlu0 %547, %v445
    %v549 = vpop.permute.xlu0 %548
    %v550 = vlaneseq
    %v551 = vshrl.u32 %v550, 7
    %v552 = vadd.s32 %v551, 8
    %553 = vset.pattern.permute.xlu0 %v552
    %554 = vperm.xlu0 %553, %v445
    %v555 = vpop.permute.xlu0 %554
    %v556 = vlaneseq
    %v557 = vshrl.u32 %v556, 7
    %559 = vset.pattern.permute.xlu0 %v557
    %560 = vperm.xlu0 %559, %v455
    %v561 = vpop.permute.xlu0 %560
    %v562 = vlaneseq
    %v563 = vshrl.u32 %v562, 7
    %v564 = vadd.s32 %v563, 8
    %565 = vset.pattern.permute.xlu0 %v564
    %566 = vperm.xlu0 %565, %v455
    %v567 = vpop.permute.xlu0 %566
    %v568 = vmul.f32 %v456, %v477
    %v569 = vmul.f32 %v457, %v483
    %v570 = vmul.f32 %v458, %v489
    %v571 = vmul.f32 %v459, %v495
    %v572 = vmul.f32 %v460, %v501
    %v573 = vmul.f32 %v461, %v507
    %v574 = vmul.f32 %v462, %v513
    %v575 = vmul.f32 %v463, %v519
    %v576 = vmul.f32 %v464, %v525
    %v577 = vmul.f32 %v465, %v531
    %v578 = vmul.f32 %v466, %v537
    %v579 = vmul.f32 %v467, %v543
    %v580 = vmul.f32 %v468, %v549
    %v581 = vmul.f32 %v469, %v555
    %v582 = vmul.f32 %v470, %v561
    %v583 = vmul.f32 %v471, %v567
    %v584 = vpack.c.bf16 %v568, %v568
    %v585 = vpack.c.bf16 %v569, %v569
    %v586 = vpack.c.bf16 %v570, %v570
    %v587 = vpack.c.bf16 %v571, %v571
    %v588 = vpack.c.bf16 %v572, %v572
    %v589 = vpack.c.bf16 %v573, %v573
    %v590 = vpack.c.bf16 %v574, %v574
    %v591 = vpack.c.bf16 %v575, %v575
    %v592 = vpack.c.bf16 %v576, %v576
    %v593 = vpack.c.bf16 %v577, %v577
    %v594 = vpack.c.bf16 %v578, %v578
    %v595 = vpack.c.bf16 %v579, %v579
    %v596 = vpack.c.bf16 %v580, %v580
    %v597 = vpack.c.bf16 %v581, %v581
    %v598 = vpack.c.bf16 %v582, %v582
    %v599 = vpack.c.bf16 %v583, %v583
    %v602 = vunpack.c.l.b16 %v39
    %v603 = vunpack.c.l.b16 %v40
    %v604 = vpack.c.b16 %v603, %v602
    %v607 = vunpack.c.l.b16 %v584
    %v608 = vunpack.c.l.b16 %v585
    %v609 = vpack.c.b16 %v608, %v607
    %v612 = vsel %vm87, %v604, 0
    %614 = vmatpush.bf16.msra.mxu0 0
    %615 = vmatpush.bf16.msra.mxu0 0
    %616 = vmatpush.bf16.msra.mxu0 0
    %617 = vmatpush.bf16.msra.mxu0 0
    %618 = vmatpush.bf16.msra.mxu0 0
    %619 = vmatpush.bf16.msra.mxu0 0
    %620 = vmatpush.bf16.msra.mxu0 0
    %621 = vmatpush.bf16.msra.mxu0 %v609
    %622 = vmatmul.bf16.gmra.mxu0 %v612
    %v623 = vpop.f32.mrf.mxu0
    %v624 = vadd.f32 0.0, %v623
    %v625 = vpop.f32.mrf.mxu0
    %v626 = vadd.f32 0.0, %v625
    %627 = vdwg.mxu0
    %v630 = vunpack.c.l.b16 %v41
    %v631 = vunpack.c.l.b16 %v42
    %v632 = vpack.c.b16 %v631, %v630
    %v635 = vunpack.c.l.b16 %v586
    %v636 = vunpack.c.l.b16 %v587
    %v637 = vpack.c.b16 %v636, %v635
    %v640 = vsel %vm87, %v632, 0
    %642 = vmatpush.bf16.msra.mxu0 0
    %643 = vmatpush.bf16.msra.mxu0 0
    %644 = vmatpush.bf16.msra.mxu0 0
    %645 = vmatpush.bf16.msra.mxu0 0
    %646 = vmatpush.bf16.msra.mxu0 0
    %647 = vmatpush.bf16.msra.mxu0 0
    %648 = vmatpush.bf16.msra.mxu0 0
    %649 = vmatpush.bf16.msra.mxu0 %v637
    %650 = vmatmul.bf16.gmra.mxu0 %v640
    %v651 = vpop.f32.mrf.mxu0
    %v652 = vadd.f32 0.0, %v651
    %v653 = vpop.f32.mrf.mxu0
    %v654 = vadd.f32 0.0, %v653
    %655 = vdwg.mxu0
    %v658 = vunpack.c.l.b16 %v43
    %v659 = vunpack.c.l.b16 %v44
    %v660 = vpack.c.b16 %v659, %v658
    %v663 = vunpack.c.l.b16 %v588
    %v664 = vunpack.c.l.b16 %v589
    %v665 = vpack.c.b16 %v664, %v663
    %v668 = vsel %vm87, %v660, 0
    %670 = vmatpush.bf16.msra.mxu0 0
    %671 = vmatpush.bf16.msra.mxu0 0
    %672 = vmatpush.bf16.msra.mxu0 0
    %673 = vmatpush.bf16.msra.mxu0 0
    %674 = vmatpush.bf16.msra.mxu0 0
    %675 = vmatpush.bf16.msra.mxu0 0
    %676 = vmatpush.bf16.msra.mxu0 0
    %677 = vmatpush.bf16.msra.mxu0 %v665
    %678 = vmatmul.bf16.gmra.mxu0 %v668
    %v679 = vpop.f32.mrf.mxu0
    %v680 = vadd.f32 0.0, %v679
    %v681 = vpop.f32.mrf.mxu0
    %v682 = vadd.f32 0.0, %v681
    %683 = vdwg.mxu0
    %v686 = vunpack.c.l.b16 %v45
    %v687 = vunpack.c.l.b16 %v46
    %v688 = vpack.c.b16 %v687, %v686
    %v691 = vunpack.c.l.b16 %v590
    %v692 = vunpack.c.l.b16 %v591
    %v693 = vpack.c.b16 %v692, %v691
    %v696 = vsel %vm87, %v688, 0
    %698 = vmatpush.bf16.msra.mxu0 0
    %699 = vmatpush.bf16.msra.mxu0 0
    %700 = vmatpush.bf16.msra.mxu0 0
    %701 = vmatpush.bf16.msra.mxu0 0
    %702 = vmatpush.bf16.msra.mxu0 0
    %703 = vmatpush.bf16.msra.mxu0 0
    %704 = vmatpush.bf16.msra.mxu0 0
    %705 = vmatpush.bf16.msra.mxu0 %v693
    %706 = vmatmul.bf16.gmra.mxu0 %v696
    %v707 = vpop.f32.mrf.mxu0
    %v708 = vadd.f32 0.0, %v707
    %v709 = vpop.f32.mrf.mxu0
    %v710 = vadd.f32 0.0, %v709
    %711 = vdwg.mxu0
    %v714 = vunpack.c.l.b16 %v47
    %v715 = vunpack.c.l.b16 %v48
    %v716 = vpack.c.b16 %v715, %v714
    %v719 = vunpack.c.l.b16 %v592
    %v720 = vunpack.c.l.b16 %v593
    %v721 = vpack.c.b16 %v720, %v719
    %v724 = vsel %vm87, %v716, 0
    %726 = vmatpush.bf16.msra.mxu0 0
    %727 = vmatpush.bf16.msra.mxu0 0
    %728 = vmatpush.bf16.msra.mxu0 0
    %729 = vmatpush.bf16.msra.mxu0 0
    %730 = vmatpush.bf16.msra.mxu0 0
    %731 = vmatpush.bf16.msra.mxu0 0
    %732 = vmatpush.bf16.msra.mxu0 0
    %733 = vmatpush.bf16.msra.mxu0 %v721
    %734 = vmatmul.bf16.gmra.mxu0 %v724
    %v735 = vpop.f32.mrf.mxu0
    %v736 = vadd.f32 0.0, %v735
    %v737 = vpop.f32.mrf.mxu0
    %v738 = vadd.f32 0.0, %v737
    %739 = vdwg.mxu0
    %v742 = vunpack.c.l.b16 %v49
    %v743 = vunpack.c.l.b16 %v50
    %v744 = vpack.c.b16 %v743, %v742
    %v747 = vunpack.c.l.b16 %v594
    %v748 = vunpack.c.l.b16 %v595
    %v749 = vpack.c.b16 %v748, %v747
    %v752 = vsel %vm87, %v744, 0
    %754 = vmatpush.bf16.msra.mxu0 0
    %755 = vmatpush.bf16.msra.mxu0 0
    %756 = vmatpush.bf16.msra.mxu0 0
    %757 = vmatpush.bf16.msra.mxu0 0
    %758 = vmatpush.bf16.msra.mxu0 0
    %759 = vmatpush.bf16.msra.mxu0 0
    %760 = vmatpush.bf16.msra.mxu0 0
    %761 = vmatpush.bf16.msra.mxu0 %v749
    %762 = vmatmul.bf16.gmra.mxu0 %v752
    %v763 = vpop.f32.mrf.mxu0
    %v764 = vadd.f32 0.0, %v763
    %v765 = vpop.f32.mrf.mxu0
    %v766 = vadd.f32 0.0, %v765
    %767 = vdwg.mxu0
    %v770 = vunpack.c.l.b16 %v51
    %v771 = vunpack.c.l.b16 %v52
    %v772 = vpack.c.b16 %v771, %v770
    %v775 = vunpack.c.l.b16 %v596
    %v776 = vunpack.c.l.b16 %v597
    %v777 = vpack.c.b16 %v776, %v775
    %v780 = vsel %vm87, %v772, 0
    %782 = vmatpush.bf16.msra.mxu0 0
    %783 = vmatpush.bf16.msra.mxu0 0
    %784 = vmatpush.bf16.msra.mxu0 0
    %785 = vmatpush.bf16.msra.mxu0 0
    %786 = vmatpush.bf16.msra.mxu0 0
    %787 = vmatpush.bf16.msra.mxu0 0
    %788 = vmatpush.bf16.msra.mxu0 0
    %789 = vmatpush.bf16.msra.mxu0 %v777
    %790 = vmatmul.bf16.gmra.mxu0 %v780
    %v791 = vpop.f32.mrf.mxu0
    %v792 = vadd.f32 0.0, %v791
    %v793 = vpop.f32.mrf.mxu0
    %v794 = vadd.f32 0.0, %v793
    %795 = vdwg.mxu0
    %v798 = vunpack.c.l.b16 %v53
    %v799 = vunpack.c.l.b16 %v54
    %v800 = vpack.c.b16 %v799, %v798
    %v803 = vunpack.c.l.b16 %v598
    %v804 = vunpack.c.l.b16 %v599
    %v805 = vpack.c.b16 %v804, %v803
    %v808 = vsel %vm87, %v800, 0
    %810 = vmatpush.bf16.msra.mxu0 0
    %811 = vmatpush.bf16.msra.mxu0 0
    %812 = vmatpush.bf16.msra.mxu0 0
    %813 = vmatpush.bf16.msra.mxu0 0
    %814 = vmatpush.bf16.msra.mxu0 0
    %815 = vmatpush.bf16.msra.mxu0 0
    %816 = vmatpush.bf16.msra.mxu0 0
    %817 = vmatpush.bf16.msra.mxu0 %v805
    %818 = vmatmul.bf16.gmra.mxu0 %v808
    %v819 = vpop.f32.mrf.mxu0
    %v820 = vadd.f32 0.0, %v819
    %v821 = vpop.f32.mrf.mxu0
    %v822 = vadd.f32 0.0, %v821
    %823 = vdwg.mxu0
    %v824 = vmul.f32 %v624, %v161
    %v825 = vmul.f32 %v626, %v171
    %v826 = vmul.f32 %v652, %v181
    %v827 = vmul.f32 %v654, %v191
    %v828 = vmul.f32 %v680, %v201
    %v829 = vmul.f32 %v682, %v211
    %v830 = vmul.f32 %v708, %v221
    %v831 = vmul.f32 %v710, %v231
    %v832 = vmul.f32 %v736, %v241
    %v833 = vmul.f32 %v738, %v251
    %v834 = vmul.f32 %v764, %v261
    %v835 = vmul.f32 %v766, %v271
    %v836 = vmul.f32 %v792, %v281
    %v837 = vmul.f32 %v794, %v291
    %v838 = vmul.f32 %v820, %v301
    %v839 = vmul.f32 %v822, %v311
    %v840 = vpack.c.bf16 %v825, %v824
    %v841 = vpack.c.bf16 %v827, %v826
    %v842 = vpack.c.bf16 %v829, %v828
    %v843 = vpack.c.bf16 %v831, %v830
    %v844 = vpack.c.bf16 %v833, %v832
    %v845 = vpack.c.bf16 %v835, %v834
    %v846 = vpack.c.bf16 %v837, %v836
    %v847 = vpack.c.bf16 %v839, %v838
    %v848 = vld [vmem:[#allocation2] sm:$0xf]
    %v849 = vld [vmem:[%s3] sm:$0x1]
    %v851 = vperm.slane %v849, 0
    %vm853 = vcmask 64512
    %v855 = vsel %vm853, %v840, 0
    %v858 = vsel %vm853, %v841, 0
    %v861 = vsel %vm853, %v842, 0
    %v864 = vsel %vm853, %v843, 0
    %v867 = vsel %vm853, %v844, 0
    %v870 = vsel %vm853, %v845, 0
    %v873 = vsel %vm853, %v846, 0
    %v876 = vsel %vm853, %v847, 0
    %vm878 = vcmask 1043456
    %v880 = vsel %vm878, %v848, 0
    %882 = vmatpush.bf16.msra.mxu0 0
    %883 = vmatpush.bf16.msra.mxu0 0
    %884 = vmatpush.bf16.msra.mxu0 0
    %885 = vmatpush.bf16.msra.mxu0 0
    %886 = vmatpush.bf16.msra.mxu0 0
    %887 = vmatpush.bf16.msra.mxu0 0
    %888 = vmatpush.bf16.msra.mxu0 0
    %889 = vmatpush.bf16.msra.mxu0 %v880
    %890 = vmatmul.bf16.gmra.mxu0 %v855
    %v891 = vpop.f32.mrf.mxu0
    %v892 = vadd.f32 %v851, %v891
    %v893 = vpop.f32.mrf.mxu0
    %v894 = vadd.f32 %v851, %v893
    %895 = vmatmul.bf16.gmra.mxu0 %v858
    %v896 = vpop.f32.mrf.mxu0
    %v897 = vadd.f32 %v851, %v896
    %v898 = vpop.f32.mrf.mxu0
    %v899 = vadd.f32 %v851, %v898
    %900 = vmatmul.bf16.gmra.mxu0 %v861
    %v901 = vpop.f32.mrf.mxu0
    %v902 = vadd.f32 %v851, %v901
    %v903 = vpop.f32.mrf.mxu0
    %v904 = vadd.f32 %v851, %v903
    %905 = vmatmul.bf16.gmra.mxu0 %v864
    %v906 = vpop.f32.mrf.mxu0
    %v907 = vadd.f32 %v851, %v906
    %v908 = vpop.f32.mrf.mxu0
    %v909 = vadd.f32 %v851, %v908
    %910 = vmatmul.bf16.gmra.mxu0 %v867
    %v911 = vpop.f32.mrf.mxu0
    %v912 = vadd.f32 %v851, %v911
    %v913 = vpop.f32.mrf.mxu0
    %v914 = vadd.f32 %v851, %v913
    %915 = vmatmul.bf16.gmra.mxu0 %v870
    %v916 = vpop.f32.mrf.mxu0
    %v917 = vadd.f32 %v851, %v916
    %v918 = vpop.f32.mrf.mxu0
    %v919 = vadd.f32 %v851, %v918
    %920 = vmatmul.bf16.gmra.mxu0 %v873
    %v921 = vpop.f32.mrf.mxu0
    %v922 = vadd.f32 %v851, %v921
    %v923 = vpop.f32.mrf.mxu0
    %v924 = vadd.f32 %v851, %v923
    %925 = vmatmul.bf16.gmra.mxu0 %v876
    %v926 = vpop.f32.mrf.mxu0
    %v927 = vadd.f32 %v851, %v926
    %v928 = vpop.f32.mrf.mxu0
    %v929 = vadd.f32 %v851, %v928
    %930 = vdwg.mxu0
    %v931 = vmax.f32 %v892, 0.0
    %v932 = vmax.f32 %v894, 0.0
    %v933 = vmax.f32 %v897, 0.0
    %v934 = vmax.f32 %v899, 0.0
    %v935 = vmax.f32 %v902, 0.0
    %v936 = vmax.f32 %v904, 0.0
    %v937 = vmax.f32 %v907, 0.0
    %v938 = vmax.f32 %v909, 0.0
    %v939 = vmax.f32 %v912, 0.0
    %v940 = vmax.f32 %v914, 0.0
    %v941 = vmax.f32 %v917, 0.0
    %v942 = vmax.f32 %v919, 0.0
    %v943 = vmax.f32 %v922, 0.0
    %v944 = vmax.f32 %v924, 0.0
    %v945 = vmax.f32 %v927, 0.0
    %v946 = vmax.f32 %v929, 0.0
    %vm947 = vcmask 261120
    %v948 = vsel %vm947, %v931, 0.0
    %v949 = vsel %vm947, %v932, 0.0
    %v950 = vadd.f32 %v948, %v949
    %v951 = vrot.slane %v950, 4
    %v952 = vadd.f32 %v950, %v951
    %v953 = vrot.slane %v952, 2
    %v954 = vadd.f32 %v952, %v953
    %v955 = vrot.slane %v954, 1
    %v956 = vadd.f32 %v954, %v955
    %v957 = vsel %vm947, %v933, 0.0
    %v958 = vsel %vm947, %v934, 0.0
    %v959 = vadd.f32 %v957, %v958
    %v960 = vrot.slane %v959, 4
    %v961 = vadd.f32 %v959, %v960
    %v962 = vrot.slane %v961, 2
    %v963 = vadd.f32 %v961, %v962
    %v964 = vrot.slane %v963, 1
    %v965 = vadd.f32 %v963, %v964
    %v966 = vsel %vm947, %v935, 0.0
    %v967 = vsel %vm947, %v936, 0.0
    %v968 = vadd.f32 %v966, %v967
    %v969 = vrot.slane %v968, 4
    %v970 = vadd.f32 %v968, %v969
    %v971 = vrot.slane %v970, 2
    %v972 = vadd.f32 %v970, %v971
    %v973 = vrot.slane %v972, 1
    %v974 = vadd.f32 %v972, %v973
    %v975 = vsel %vm947, %v937, 0.0
    %v976 = vsel %vm947, %v938, 0.0
    %v977 = vadd.f32 %v975, %v976
    %v978 = vrot.slane %v977, 4
    %v979 = vadd.f32 %v977, %v978
    %v980 = vrot.slane %v979, 2
    %v981 = vadd.f32 %v979, %v980
    %v982 = vrot.slane %v981, 1
    %v983 = vadd.f32 %v981, %v982
    %v984 = vsel %vm947, %v939, 0.0
    %v985 = vsel %vm947, %v940, 0.0
    %v986 = vadd.f32 %v984, %v985
    %v987 = vrot.slane %v986, 4
    %v988 = vadd.f32 %v986, %v987
    %v989 = vrot.slane %v988, 2
    %v990 = vadd.f32 %v988, %v989
    %v991 = vrot.slane %v990, 1
    %v992 = vadd.f32 %v990, %v991
    %v993 = vsel %vm947, %v941, 0.0
    %v994 = vsel %vm947, %v942, 0.0
    %v995 = vadd.f32 %v993, %v994
    %v996 = vrot.slane %v995, 4
    %v997 = vadd.f32 %v995, %v996
    %v998 = vrot.slane %v997, 2
    %v999 = vadd.f32 %v997, %v998
    %v1000 = vrot.slane %v999, 1
    %v1001 = vadd.f32 %v999, %v1000
    %v1002 = vsel %vm947, %v943, 0.0
    %v1003 = vsel %vm947, %v944, 0.0
    %v1004 = vadd.f32 %v1002, %v1003
    %v1005 = vrot.slane %v1004, 4
    %v1006 = vadd.f32 %v1004, %v1005
    %v1007 = vrot.slane %v1006, 2
    %v1008 = vadd.f32 %v1006, %v1007
    %v1009 = vrot.slane %v1008, 1
    %v1010 = vadd.f32 %v1008, %v1009
    %v1011 = vsel %vm947, %v945, 0.0
    %v1012 = vsel %vm947, %v946, 0.0
    %v1013 = vadd.f32 %v1011, %v1012
    %v1014 = vrot.slane %v1013, 4
    %v1015 = vadd.f32 %v1013, %v1014
    %v1016 = vrot.slane %v1015, 2
    %v1017 = vadd.f32 %v1015, %v1016
    %v1018 = vrot.slane %v1017, 1
    %v1019 = vadd.f32 %v1017, %v1018
    %v1020 = vrcp.pop 16.0
    %v1021 = vmul.f32 16.0, %v1020
    %v1022 = vsub.f32 1.0, %v1021
    %v1023 = vmul.f32 %v1020, %v1022
    %v1024 = vadd.f32 %v1020, %v1023
    %vm1025 = vweird.f32 %v1020
    %v1026 = vsel %vm1025, %v1020, %v1024
    %v1027 = vmul.f32 %v956, %v1026
    %v1028 = vmul.f32 %v965, %v1026
    %v1029 = vmul.f32 %v974, %v1026
    %v1030 = vmul.f32 %v983, %v1026
    %v1031 = vmul.f32 %v992, %v1026
    %v1032 = vmul.f32 %v1001, %v1026
    %v1033 = vmul.f32 %v1010, %v1026
    %v1034 = vmul.f32 %v1019, %v1026
    %v1035 = vld [vmem:[%s4] sm:$0xff]
    %v1036 = vld [vmem:[%s4 + $0x8] sm:$0xff]
    %v1037 = vld [vmem:[%s4 + $0x10] sm:$0xff]
    %v1038 = vld [vmem:[%s4 + $0x18] sm:$0xff]
    %v1039 = vld [vmem:[%s5] sm:$0x1]
    %v1041 = vperm.slane %v1039, 0
    %vm1051 = vcmask 1041409
    %v1052 = vsel %vm1051, %v1028, %v1027
    %vm1053 = vcmask 1042434
    %v1054 = vsel %vm1053, %v1029, %v1052
    %vm1055 = vcmask 1043459
    %v1056 = vsel %vm1055, %v1030, %v1054
    %vm1057 = vcmask 1044484
    %v1058 = vsel %vm1057, %v1031, %v1056
    %vm1059 = vcmask 1045509
    %v1060 = vsel %vm1059, %v1032, %v1058
    %vm1061 = vcmask 1046534
    %v1062 = vsel %vm1061, %v1033, %v1060
    %vm1063 = vcmask 1047559
    %v1064 = vsel %vm1063, %v1034, %v1062
    %v1065 = vsel %vm947, %v1064, 0
    %1067 = vmatpush.msra.mxu0 0.0
    %1068 = vmatpush.msra.mxu0 0.0
    %1069 = vmatpush.msra.mxu0 0.0
    %1070 = vmatpush.msra.mxu0 0.0
    %1071 = vmatpush.msra.mxu0 0.0
    %1072 = vmatpush.msra.mxu0 0.0
    %1073 = vmatpush.msra.mxu0 0.0
    %1074 = vmatpush.msra.mxu0 0.0
    %1075 = vmatpush.msra.mxu0 0.0
    %1076 = vmatpush.msra.mxu0 0.0
    %1077 = vmatpush.msra.mxu0 0.0
    %1078 = vmatpush.msra.mxu0 0.0
    %1079 = vmatpush.msra.mxu0 %v1038
    %1080 = vmatpush.msra.mxu0 %v1037
    %1081 = vmatpush.msra.mxu0 %v1036
    %1082 = vmatpush.msra.mxu0 %v1035
    %1083 = vmatmul.f32.gmra.mxu0 %v1065
    %v1084 = vpop.f32.mrf.mxu0
    %v1085 = vadd.f32 %v1041, %v1084
    %1086 = vdwg.mxu0
    %1087 = vst [vmem:[#allocation5] sm:$0xff] %v1085
    // Predicated region
    $region30: #{tpu_custom_call.1} parent=1 // pred_check
      _
    $region31: #{tpu_custom_call.1} parent=1 // pred_check_branch
      %1089 = sbr.rel (0) target = $region33
    $region32: #{tpu_custom_call.1} parent=1 // pred_region
      %1091 = vsyncadd [#allocation4], 0
      %s1093 = sshll.u32 [#allocation5], 4
      %s1094 = int_to_ptr.vmem [resolvable:$true] %s1093
      %s1095 = sshll.u32 %s6, 4
      %s1096 = int_to_ptr.hbm [resolvable:$true] %s1095
      %1098 = dma.vmem_to_hbm [thread:$0]  %s1094, 128, %s1096, [#allocation4]
    $region33: #{tpu_custom_call.1} parent=1 // pred_fallthru
      _
    // Predicated region
    $region34: #{tpu_custom_call.1} parent=1 // pred_check
      _
    $region35: #{tpu_custom_call.1} parent=1 // pred_check_branch
      %1100 = sbr.rel (0) target = $region37
    $region36: #{tpu_custom_call.1} parent=1 // pred_region
      %1102 = dma.done [#allocation4], 128
    $region37: #{tpu_custom_call.1} parent=1 // pred_fallthru
      _
    %1103 = vsyncpa [#allocation3], 1
    %1104 = vsyncpa [#allocation4], 1

</llo_original>
